<compile_context>
chip_gen: v6e
topology: v6e:2x2x1
jax: 0.10.0
libtpu: 0.0.40
codegen_flags: <defaults>
</compile_context>

<pallas_src>
import functools

import jax
import jax.numpy as jnp
from jax.experimental import pallas as pl
from jax.experimental.pallas import tpu as pltpu

EPS = 1e-6  # torch.pairwise_distance default eps (added to the difference)


def _round_up(n, m):
    return ((n + m - 1) // m) * m


def _sublane_multiple(itemsize):
    # Sub-32-bit dtypes pack along sublanes: bf16 vreg holds 16 rows, int8/fp8 holds 32.
    return max(8, 32 // max(1, itemsize))


def _pick_segments(batch, d):
    # Fold G samples per 128-lane row when D < 128 (full lane density for the
    # elementwise stream).  Only when G divides B so the wrapper reshape stays free.
    if d >= 128:
        return 1
    max_g = min(128 // d, 16)  # cap the static per-segment unroll in the kernel
    for g in range(max_g, 0, -1):
        if batch % g == 0:
            return g
    return 1


def _pick_block_rows(rows, lane_width, itemsize, sublane):
    # Budget: 2 inputs x 2 pipeline buffers x native tile  +  ~3 f32 temporaries
    # (xf / yf / diff / sq live ranges) <= ~24 MiB total -> 2-4 MiB per input tile,
    # comfortably under the explicit 40 MiB vmem_limit on every generation incl. v7x.
    budget_bytes = 24 * 1024 * 1024
    per_row_bytes = lane_width * (4 * itemsize + 3 * 4)
    tr = budget_bytes // max(1, per_row_bytes)
    tr = max(sublane, (tr // sublane) * sublane)
    return min(tr, _round_up(rows, sublane))


def _contrastive_loss_kernel(x_ref, y_ref, lab_ref, out_ref, *,
                             rows_valid, block_rows, seg, d, margin, mask_needed):
    # x_ref, y_ref: (TR, seg*d); lab_ref: (TR, seg); out_ref: (1, 8, 128) partial slab.
    i = pl.program_id(0)
    xf = x_ref[...].astype(jnp.float32)
    yf = y_ref[...].astype(jnp.float32)
    diff = xf - yf + EPS                                   # full-lane-density VPU work
    sq = diff * diff
    lab = lab_ref[...].astype(jnp.float32)                 # (TR, seg)

    per_row = jnp.zeros((block_rows, 1), jnp.float32)
    for s in range(seg):                                   # static unroll, seg <= 16
        d2 = jnp.sum(sq[:, s * d:(s + 1) * d], axis=-1, keepdims=True)   # (TR, 1)
        dist = jnp.sqrt(d2)                                               # EUP
        lg = lab[:, s:s + 1]                                              # (TR, 1)
        hinge = jnp.maximum(margin - dist, 0.0)
        per_row = per_row + (1.0 - lg) * d2 + lg * (hinge * hinge)

    out_ref[...] = jnp.broadcast_to(jnp.sum(per_row), out_ref.shape).astype(out_ref.dtype)

    if mask_needed:
        # Only the last (ragged) tile carries padded rows; gate the mask there.
        @pl.when(i == pl.num_programs(0) - 1)
        def _():
            row = jax.lax.broadcasted_iota(jnp.int32, per_row.shape, 0) + i * block_rows
            masked = jnp.where(row < rows_valid, per_row, 0.0)
            out_ref[...] = jnp.broadcast_to(jnp.sum(masked),
                                            out_ref.shape).astype(out_ref.dtype)


def contrastive_loss(x, y, labels, *, margin=0.2, block_rows=None):
    """x, y: (B, D); labels: (B,) -> scalar float32 loss."""
    B, D = x.shape
    assert y.shape == (B, D) and labels.shape[0] == B

    g = _pick_segments(B, D)        # samples folded per lane-row
    R = B // g                      # packed row count
    L = g * D                       # packed lane width

    xp = jnp.reshape(x, (R, L))     # contiguous reshape: free, native dtype kept
    yp = jnp.reshape(y, (R, L))
    lab = jnp.reshape(labels, (R, g))
    if not jnp.issubdtype(lab.dtype, jnp.floating):
        lab = lab.astype(jnp.float32)   # single cast; float labels pass through native

    sublane = _sublane_multiple(x.dtype.itemsize)
    rp = _round_up(R, sublane)
    if block_rows is None:
        TR = _pick_block_rows(R, L, x.dtype.itemsize, sublane)
        if TR >= rp:
            if rp > sublane:
                # Whole batch fits one tile: split so both v7x TensorCores get a block.
                TR = max(sublane, _round_up(pl.cdiv(R, 2), sublane))
            elif R < sublane:
                TR = R              # tiny batch: full-dim block, no padded rows at all
    else:
        TR = max(sublane, _round_up(block_rows, sublane))
        TR = min(TR, rp)
    num_blocks = pl.cdiv(R, TR)
    mask_needed = (R % TR) != 0

    kernel = functools.partial(
        _contrastive_loss_kernel,
        rows_valid=R, block_rows=TR, seg=g, d=D,
        margin=float(margin), mask_needed=mask_needed)

    bytes_accessed = int(x.size * x.dtype.itemsize + y.size * y.dtype.itemsize
                         + lab.size * lab.dtype.itemsize
                         + num_blocks * 8 * 128 * 4)
    cost = pl.CostEstimate(flops=int(4 * B * D + 10 * B),
                           transcendentals=int(B),
                           bytes_accessed=bytes_accessed)

    partials = pl.pallas_call(
        kernel,
        out_shape=jax.ShapeDtypeStruct((num_blocks, 8, 128), jnp.float32),
        grid=(num_blocks,),
        in_specs=[
            pl.BlockSpec((TR, L), lambda i: (i, 0)),
            pl.BlockSpec((TR, L), lambda i: (i, 0)),
            pl.BlockSpec((TR, g), lambda i: (i, 0)),
        ],
        out_specs=pl.BlockSpec((1, 8, 128), lambda i: (i, 0, 0)),
        compiler_params=pltpu.CompilerParams(
            dimension_semantics=("parallel",),
            vmem_limit_bytes=40 * 1024 * 1024),
        cost_estimate=cost,
    )(xp, yp, lab)

    # Each block's partial sum is replicated across its (8, 128) slab; take one element.
    return jnp.sum(partials[:, 0, 0]) / jnp.float32(B)


def _reference(x, y, labels, margin=0.2):
    # Pure-JAX reference mirroring the PyTorch semantics exactly.
    dists = jnp.sqrt(jnp.sum((x.astype(jnp.float32) - y.astype(jnp.float32) + EPS) ** 2,
                             axis=-1))
    return jnp.mean((1.0 - labels) * dists ** 2
                    + labels * jnp.maximum(margin - dists, 0.0) ** 2)


if __name__ == "__main__":
    key = jax.random.PRNGKey(0)
    kx, ky, kl = jax.random.split(key, 3)

    # Small default config: D=32 triggers lane packing (4 samples per 128-lane row).
    B, D = 24, 32
    x = jax.random.normal(kx, (B, D), dtype=jnp.float32)
    y = jax.random.normal(ky, (B, D), dtype=jnp.float32)
    labels = jax.random.bernoulli(kl, 0.5, (B,)).astype(jnp.float32)

    loss = contrastive_loss(x, y, labels)
    jax.block_until_ready(loss)
    ref = _reference(x, y, labels)
    assert jnp.allclose(loss, ref, rtol=1e-5, atol=1e-6), (loss, ref)

    # Multi-block + ragged-tail path: 3 pipelined grid steps, masked last tile.
    B2, D2 = 72, 32
    kx2, ky2, kl2 = jax.random.split(jax.random.PRNGKey(0), 3)
    x2 = jax.random.normal(kx2, (B2, D2), dtype=jnp.float32)
    y2 = jax.random.normal(ky2, (B2, D2), dtype=jnp.float32)
    labels2 = jax.random.bernoulli(kl2, 0.5, (B2,)).astype(jnp.float32)

    loss2 = contrastive_loss(x2, y2, labels2, block_rows=8)
    jax.block_until_ready(loss2)
    ref2 = _reference(x2, y2, labels2)
    assert jnp.allclose(loss2, ref2, rtol=1e-5, atol=1e-6), (loss2, ref2)

    print("KERNEL_OK")
</pallas_src>

<mosaic_0001>
module attributes {stable_mosaic.version = 11 : i64} {
  func.func @_contrastive_loss_kernel(%arg0: i32, %arg1: memref<6x128xf32, #tpu.memory_space<vmem>>, %arg2: memref<6x128xf32, #tpu.memory_space<vmem>>, %arg3: memref<6x4xf32, #tpu.memory_space<vmem>>, %arg4: memref<1x8x128xf32, #tpu.memory_space<vmem>>) attributes {dimension_semantics = [#tpu.dimension_semantics<parallel>], iteration_bounds = array<i64: 1>, scalar_prefetch = 0 : i64, scratch_operands = 0 : i64, tpu.core_type = #tpu.core_type<tc>, window_params = [{transform_indices = @transform_0, window_bounds = array<i64: 6, 128>}, {transform_indices = @transform_1, window_bounds = array<i64: 6, 128>}, {transform_indices = @transform_2, window_bounds = array<i64: 6, 4>}, {transform_indices = @transform_3, window_bounds = array<i64: 1, 8, 128>}]} {
    %c0 = arith.constant 0 : index
    %c0_0 = arith.constant 0 : index
    %0 = vector.load %arg1[%c0, %c0_0] : memref<6x128xf32, #tpu.memory_space<vmem>>, vector<6x128xf32>
    %c0_1 = arith.constant 0 : index
    %c0_2 = arith.constant 0 : index
    %1 = vector.load %arg2[%c0_1, %c0_2] : memref<6x128xf32, #tpu.memory_space<vmem>>, vector<6x128xf32>
    %2 = arith.subf %0, %1 : vector<6x128xf32>
    %cst = arith.constant 9.99999997E-7 : f32
    %3 = vector.broadcast %cst : f32 to vector<6x128xf32>
    %4 = arith.addf %2, %3 : vector<6x128xf32>
    %5 = arith.mulf %4, %4 : vector<6x128xf32>
    %c0_3 = arith.constant 0 : index
    %c0_4 = arith.constant 0 : index
    %6 = vector.load %arg3[%c0_3, %c0_4] : memref<6x4xf32, #tpu.memory_space<vmem>>, vector<6x4xf32>
    %cst_5 = arith.constant 0.000000e+00 : f32
    %7 = vector.broadcast %cst_5 : f32 to vector<6x1xf32>
    %8 = vector.extract_strided_slice %5 {offsets = [0, 0], sizes = [6, 32], strides = [1, 1]} : vector<6x128xf32> to vector<6x32xf32>
    %cst_6 = arith.constant dense<0.000000e+00> : vector<6xf32>
    %9 = vector.multi_reduction <add>, %8, %cst_6 [1] : vector<6x32xf32> to vector<6xf32>
    %10 = vector.shape_cast %9 : vector<6xf32> to vector<6x1xf32>
    %11 = math.sqrt %10 : vector<6x1xf32>
    %12 = vector.extract_strided_slice %6 {offsets = [0, 0], sizes = [6, 1], strides = [1, 1]} : vector<6x4xf32> to vector<6x1xf32>
    %cst_7 = arith.constant 2.000000e-01 : f32
    %13 = vector.broadcast %cst_7 : f32 to vector<6x1xf32>
    %14 = arith.subf %13, %11 : vector<6x1xf32>
    %cst_8 = arith.constant 0.000000e+00 : f32
    %15 = vector.broadcast %cst_8 : f32 to vector<6x1xf32>
    %16 = arith.maximumf %14, %15 : vector<6x1xf32>
    %cst_9 = arith.constant 1.000000e+00 : f32
    %17 = vector.broadcast %cst_9 : f32 to vector<6x1xf32>
    %18 = arith.subf %17, %12 : vector<6x1xf32>
    %19 = arith.mulf %18, %10 : vector<6x1xf32>
    %20 = arith.addf %7, %19 : vector<6x1xf32>
    %21 = arith.mulf %16, %16 : vector<6x1xf32>
    %22 = arith.mulf %12, %21 : vector<6x1xf32>
    %23 = arith.addf %20, %22 : vector<6x1xf32>
    %24 = vector.extract_strided_slice %5 {offsets = [0, 32], sizes = [6, 32], strides = [1, 1]} : vector<6x128xf32> to vector<6x32xf32>
    %cst_10 = arith.constant dense<0.000000e+00> : vector<6xf32>
    %25 = vector.multi_reduction <add>, %24, %cst_10 [1] : vector<6x32xf32> to vector<6xf32>
    %26 = vector.shape_cast %25 : vector<6xf32> to vector<6x1xf32>
    %27 = math.sqrt %26 : vector<6x1xf32>
    %28 = vector.extract_strided_slice %6 {offsets = [0, 1], sizes = [6, 1], strides = [1, 1]} : vector<6x4xf32> to vector<6x1xf32>
    %cst_11 = arith.constant 2.000000e-01 : f32
    %29 = vector.broadcast %cst_11 : f32 to vector<6x1xf32>
    %30 = arith.subf %29, %27 : vector<6x1xf32>
    %cst_12 = arith.constant 0.000000e+00 : f32
    %31 = vector.broadcast %cst_12 : f32 to vector<6x1xf32>
    %32 = arith.maximumf %30, %31 : vector<6x1xf32>
    %cst_13 = arith.constant 1.000000e+00 : f32
    %33 = vector.broadcast %cst_13 : f32 to vector<6x1xf32>
    %34 = arith.subf %33, %28 : vector<6x1xf32>
    %35 = arith.mulf %34, %26 : vector<6x1xf32>
    %36 = arith.addf %23, %35 : vector<6x1xf32>
    %37 = arith.mulf %32, %32 : vector<6x1xf32>
    %38 = arith.mulf %28, %37 : vector<6x1xf32>
    %39 = arith.addf %36, %38 : vector<6x1xf32>
    %40 = vector.extract_strided_slice %5 {offsets = [0, 64], sizes = [6, 32], strides = [1, 1]} : vector<6x128xf32> to vector<6x32xf32>
    %cst_14 = arith.constant dense<0.000000e+00> : vector<6xf32>
    %41 = vector.multi_reduction <add>, %40, %cst_14 [1] : vector<6x32xf32> to vector<6xf32>
    %42 = vector.shape_cast %41 : vector<6xf32> to vector<6x1xf32>
    %43 = math.sqrt %42 : vector<6x1xf32>
    %44 = vector.extract_strided_slice %6 {offsets = [0, 2], sizes = [6, 1], strides = [1, 1]} : vector<6x4xf32> to vector<6x1xf32>
    %cst_15 = arith.constant 2.000000e-01 : f32
    %45 = vector.broadcast %cst_15 : f32 to vector<6x1xf32>
    %46 = arith.subf %45, %43 : vector<6x1xf32>
    %cst_16 = arith.constant 0.000000e+00 : f32
    %47 = vector.broadcast %cst_16 : f32 to vector<6x1xf32>
    %48 = arith.maximumf %46, %47 : vector<6x1xf32>
    %cst_17 = arith.constant 1.000000e+00 : f32
    %49 = vector.broadcast %cst_17 : f32 to vector<6x1xf32>
    %50 = arith.subf %49, %44 : vector<6x1xf32>
    %51 = arith.mulf %50, %42 : vector<6x1xf32>
    %52 = arith.addf %39, %51 : vector<6x1xf32>
    %53 = arith.mulf %48, %48 : vector<6x1xf32>
    %54 = arith.mulf %44, %53 : vector<6x1xf32>
    %55 = arith.addf %52, %54 : vector<6x1xf32>
    %56 = vector.extract_strided_slice %5 {offsets = [0, 96], sizes = [6, 32], strides = [1, 1]} : vector<6x128xf32> to vector<6x32xf32>
    %cst_18 = arith.constant dense<0.000000e+00> : vector<6xf32>
    %57 = vector.multi_reduction <add>, %56, %cst_18 [1] : vector<6x32xf32> to vector<6xf32>
    %58 = vector.shape_cast %57 : vector<6xf32> to vector<6x1xf32>
    %59 = math.sqrt %58 : vector<6x1xf32>
    %60 = vector.extract_strided_slice %6 {offsets = [0, 3], sizes = [6, 1], strides = [1, 1]} : vector<6x4xf32> to vector<6x1xf32>
    %cst_19 = arith.constant 2.000000e-01 : f32
    %61 = vector.broadcast %cst_19 : f32 to vector<6x1xf32>
    %62 = arith.subf %61, %59 : vector<6x1xf32>
    %cst_20 = arith.constant 0.000000e+00 : f32
    %63 = vector.broadcast %cst_20 : f32 to vector<6x1xf32>
    %64 = arith.maximumf %62, %63 : vector<6x1xf32>
    %cst_21 = arith.constant 1.000000e+00 : f32
    %65 = vector.broadcast %cst_21 : f32 to vector<6x1xf32>
    %66 = arith.subf %65, %60 : vector<6x1xf32>
    %67 = arith.mulf %66, %58 : vector<6x1xf32>
    %68 = arith.addf %55, %67 : vector<6x1xf32>
    %69 = arith.mulf %64, %64 : vector<6x1xf32>
    %70 = arith.mulf %60, %69 : vector<6x1xf32>
    %71 = arith.addf %68, %70 : vector<6x1xf32>
    %72 = vector.shape_cast %71 : vector<6x1xf32> to vector<1x6x1xf32>
    %cst_22 = arith.constant dense<0.000000e+00> : vector<1xf32>
    %73 = vector.multi_reduction <add>, %72, %cst_22 [1, 2] : vector<1x6x1xf32> to vector<1xf32>
    %74 = vector.shape_cast %73 : vector<1xf32> to vector<1x1x1xf32>
    %75 = vector.extract %74[0, 0, 0] : f32 from vector<1x1x1xf32>
    %76 = vector.broadcast %75 : f32 to vector<1x8x128xf32>
    %c0_23 = arith.constant 0 : index
    %c0_24 = arith.constant 0 : index
    %c0_25 = arith.constant 0 : index
    %77 = vector.load %arg4[%c0_23, %c0_24, %c0_25] : memref<1x8x128xf32, #tpu.memory_space<vmem>>, vector<1x8x128xf32>
    tpu.vector_store %arg4[%c0_23, %c0_24, %c0_25], %76 {strides = array<i32>} : memref<1x8x128xf32, #tpu.memory_space<vmem>>, vector<1x8x128xf32>,
    return
  }
  func.func @transform_0(%arg0: i32) -> (i32, i32) {
    %c0_i32 = arith.constant 0 : i32
    %c0_i32_0 = arith.constant 0 : i32
    return %arg0, %c0_i32 : i32, i32
  }
  func.func @transform_1(%arg0: i32) -> (i32, i32) {
    %c0_i32 = arith.constant 0 : i32
    %c0_i32_0 = arith.constant 0 : i32
    return %arg0, %c0_i32 : i32, i32
  }
  func.func @transform_2(%arg0: i32) -> (i32, i32) {
    %c0_i32 = arith.constant 0 : i32
    %c0_i32_0 = arith.constant 0 : i32
    return %arg0, %c0_i32 : i32, i32
  }
  func.func @transform_3(%arg0: i32) -> (i32, i32, i32) {
    %c0_i32 = arith.constant 0 : i32
    %c0_i32_0 = arith.constant 0 : i32
    %c0_i32_1 = arith.constant 0 : i32
    return %arg0, %c0_i32, %c0_i32_0 : i32, i32, i32
  }
}

</mosaic_0001>

<llo_original>
// kernel: tpu_custom_call.1
$region0: #{tpu_custom_call.1}
  #allocation0 [shape = 'u32[]', space=smem, size = 0x4, offset = 0x4, fixed_abs, tag = 'smem constant byte address 0x4 - core index']
  #allocation1 [shape = 'u32[144,128]{1,0:T(1,128)}', space=vmem, size = 0x12000, scoped, tag = 'internal scratch']
  %s0 = inlined_call_operand.vmem [shape: f32[6,128], index: 0, kind: input, shape index: {}]
  %s1 = inlined_call_operand.hbm [shape: f32[6,128], index: 1, kind: input, shape index: {}]
  %s2 = inlined_call_operand.vmem [shape: f32[6,4], index: 2, kind: input, shape index: {}]
  %s3 = inlined_call_operand.hbm [shape: f32[1,8,128], index: 3, kind: output, shape index: {}]
  %s4 = sld [smem:[#allocation0]]
  $region26: #{tpu_custom_call.1} parent=0
    _
  %s6 = ssub.s32 1, %s4
  %s7 = scalar_select 0, %s6, %s4
  $region1: #{tpu_custom_call.1} parent=0
    #allocation2 [shape = 'u8[4096]{0}', space=vmem, size = 0x1000, scoped, tag = 'input window, operand 1, single buffered']
    #allocation3 [shape = 's32[1]{0}', space=sflag, size = 0x4, scoped, tag = 'scoped memory for tpu_custom_call.1']
    #allocation4 [shape = 's32[1]{0}', space=sflag, size = 0x4, scoped, tag = 'scoped memory for tpu_custom_call.1']
    #allocation5 [shape = 'u8[4096]{0}', space=vmem, size = 0x1000, scoped, tag = 'output window, operand 0, single buffered']
    %8 = vsyncpa [#allocation3], 0
    %9 = vsyncpa [#allocation4], 0
    // Predicated region
    $region2: #{tpu_custom_call.1} parent=1 // pred_check
      _
    $region3: #{tpu_custom_call.1} parent=1 // pred_check_branch
      %11 = sbr.rel (0) target = $region5
    $region4: #{tpu_custom_call.1} parent=1 // pred_region
      _
    $region5: #{tpu_custom_call.1} parent=1 // pred_fallthru
      _
    // Predicated region
    $region6: #{tpu_custom_call.1} parent=1 // pred_check
      _
    $region7: #{tpu_custom_call.1} parent=1 // pred_check_branch
      %13 = sbr.rel (0) target = $region9
    $region8: #{tpu_custom_call.1} parent=1 // pred_region
      %s15 = ssub.s32 128, 128
      %16 = vsyncadd [#allocation3], %s15
      %s18 = sshll.u32 [#allocation2], 4
      %s19 = int_to_ptr.vmem [resolvable:$true] %s18
      %21 = dma.hbm_to_vmem [thread:$0]  %s1, 128, %s19, [#allocation3]
    $region9: #{tpu_custom_call.1} parent=1 // pred_fallthru
      _
    // Predicated region
    $region10: #{tpu_custom_call.1} parent=1 // pred_check
      _
    $region11: #{tpu_custom_call.1} parent=1 // pred_check_branch
      %23 = sbr.rel (0) target = $region13
    $region12: #{tpu_custom_call.1} parent=1 // pred_region
      _
    $region13: #{tpu_custom_call.1} parent=1 // pred_fallthru
      _
    // Predicated region
    $region14: #{tpu_custom_call.1} parent=1 // pred_check
      _
    $region15: #{tpu_custom_call.1} parent=1 // pred_check_branch
      %25 = sbr.rel (0) target = $region17
    $region16: #{tpu_custom_call.1} parent=1 // pred_region
      %26 = dma.done [#allocation3], 128
    $region17: #{tpu_custom_call.1} parent=1 // pred_fallthru
      _
    %v27 = vld [vmem:[%s0] sm:$0x3f]
    %v28 = vld [vmem:[#allocation2] sm:$0x3f]
    %v29 = vsub.f32 %v27, %v28
    %v30 = vadd.f32 %v29, 1e-06
    %v31 = vmul.f32 %v30, %v30
    %v32 = vld [vmem:[%s2] sm:$0x3f]
    %vm33 = vcmask 259072
    %v34 = vsel %vm33, %v31, 0.0
    %35 = vadd.xlane.f32.xlu0 %v34
    %v36 = vpop.xlane.xlu0 %35
    %v37 = vrsqrt.pop %v36
    %v38 = vmul.f32 %v36, %v37
    %vm39 = vcmp.eq.f32.partialorder %v36, inf
    %v40 = vsel %vm39, %v36, %v38
    %vm41 = vcmp.eq.f32.partialorder %v36, 0.0
    %v42 = vand.u32 %v36, 2147483648
    %v43 = vsel %vm41, %v42, %v40
    %v44 = vsub.f32 0.2, %v43
    %v45 = vmax.f32 %v44, 0.0
    %v46 = vsub.f32 1.0, %v32
    %v47 = vmul.f32 %v46, %v36
    %v48 = vadd.f32 %v47, 0.0
    %v49 = vmul.f32 %v45, %v45
    %v50 = vmul.f32 %v32, %v49
    %v51 = vadd.f32 %v48, %v50
    %53 = vrot.lane.b32.xlu0 %v31, 96
    %v54 = vpop.permute.xlu0 %53
    %v56 = vsel %vm33, %v54, 0.0
    %57 = vadd.xlane.f32.xlu0 %v56
    %v58 = vpop.xlane.xlu0 %57
    %v59 = vrsqrt.pop %v58
    %v60 = vmul.f32 %v58, %v59
    %vm61 = vcmp.eq.f32.partialorder %v58, inf
    %v62 = vsel %vm61, %v58, %v60
    %vm63 = vcmp.eq.f32.partialorder %v58, 0.0
    %v64 = vand.u32 %v58, 2147483648
    %v65 = vsel %vm63, %v64, %v62
    %v66 = vsub.f32 0.2, %v65
    %v67 = vmax.f32 %v66, 0.0
    %v68 = vmul.f32 %v46, %v58
    %70 = vrot.lane.b32.xlu0 %v68, 127
    %v71 = vpop.permute.xlu0 %70
    %v73 = vadd.f32 %v51, %v71
    %v74 = vmul.f32 %v67, %v67
    %v75 = vmul.f32 %v32, %v74
    %77 = vrot.lane.b32.xlu0 %v75, 127
    %v78 = vpop.permute.xlu0 %77
    %v80 = vadd.f32 %v73, %v78
    %81 = vrot.lane.b32.xlu0 %v31, 64
    %v82 = vpop.permute.xlu0 %81
    %v84 = vsel %vm33, %v82, 0.0
    %85 = vadd.xlane.f32.xlu0 %v84
    %v86 = vpop.xlane.xlu0 %85
    %v87 = vrsqrt.pop %v86
    %v88 = vmul.f32 %v86, %v87
    %vm89 = vcmp.eq.f32.partialorder %v86, inf
    %v90 = vsel %vm89, %v86, %v88
    %vm91 = vcmp.eq.f32.partialorder %v86, 0.0
    %v92 = vand.u32 %v86, 2147483648
    %v93 = vsel %vm91, %v92, %v90
    %v94 = vsub.f32 0.2, %v93
    %v95 = vmax.f32 %v94, 0.0
    %v96 = vmul.f32 %v46, %v86
    %98 = vrot.lane.b32.xlu0 %v96, 126
    %v99 = vpop.permute.xlu0 %98
    %v101 = vadd.f32 %v80, %v99
    %v102 = vmul.f32 %v95, %v95
    %v103 = vmul.f32 %v32, %v102
    %105 = vrot.lane.b32.xlu0 %v103, 126
    %v106 = vpop.permute.xlu0 %105
    %v108 = vadd.f32 %v101, %v106
    %109 = vrot.lane.b32.xlu0 %v31, 32
    %v110 = vpop.permute.xlu0 %109
    %v112 = vsel %vm33, %v110, 0.0
    %113 = vadd.xlane.f32.xlu0 %v112
    %v114 = vpop.xlane.xlu0 %113
    %v115 = vrsqrt.pop %v114
    %v116 = vmul.f32 %v114, %v115
    %vm117 = vcmp.eq.f32.partialorder %v114, inf
    %v118 = vsel %vm117, %v114, %v116
    %vm119 = vcmp.eq.f32.partialorder %v114, 0.0
    %v120 = vand.u32 %v114, 2147483648
    %v121 = vsel %vm119, %v120, %v118
    %v122 = vsub.f32 0.2, %v121
    %v123 = vmax.f32 %v122, 0.0
    %v124 = vmul.f32 %v46, %v114
    %126 = vrot.lane.b32.xlu0 %v124, 125
    %v127 = vpop.permute.xlu0 %126
    %v129 = vadd.f32 %v108, %v127
    %v130 = vmul.f32 %v123, %v123
    %v131 = vmul.f32 %v32, %v130
    %133 = vrot.lane.b32.xlu0 %v131, 125
    %v134 = vpop.permute.xlu0 %133
    %v136 = vadd.f32 %v129, %v134
    %vm137 = vcmask 5120
    %v138 = vsel %vm137, %v136, 0.0
    %139 = vadd.xlane.f32.xlu0 %v138
    %v140 = vpop.xlane.xlu0 %139
    %v141 = vrot.slane %v140, 4
    %v142 = vadd.f32 %v140, %v141
    %v143 = vrot.slane %v142, 2
    %v144 = vadd.f32 %v142, %v143
    %v145 = vrot.slane %v144, 1
    %v146 = vadd.f32 %v144, %v145
    %s147 = vtos %v146
    %v148 = vstv %s147
    %149 = vst [vmem:[#allocation5] sm:$0xff] %v148
    // Predicated region
    $region18: #{tpu_custom_call.1} parent=1 // pred_check
      _
    $region19: #{tpu_custom_call.1} parent=1 // pred_check_branch
      %151 = sbr.rel (0) target = $region21
    $region20: #{tpu_custom_call.1} parent=1 // pred_region
      %s153 = ssub.s32 128, 128
      %154 = vsyncadd [#allocation4], %s153
      %s156 = sshll.u32 [#allocation5], 4
      %s157 = int_to_ptr.vmem [resolvable:$true] %s156
      %159 = dma.vmem_to_hbm [thread:$0]  %s157, 128, %s3, [#allocation4]
    $region21: #{tpu_custom_call.1} parent=1 // pred_fallthru
      _
    // Predicated region
    $region22: #{tpu_custom_call.1} parent=1 // pred_check
      _
    $region23: #{tpu_custom_call.1} parent=1 // pred_check_branch
      %161 = sbr.rel (0) target = $region25
    $region24: #{tpu_custom_call.1} parent=1 // pred_region
      %162 = dma.done [#allocation4], 128
    $region25: #{tpu_custom_call.1} parent=1 // pred_fallthru
      _
    %163 = vsyncpa [#allocation3], 1
    %164 = vsyncpa [#allocation4], 1

</llo_original>
